<compile_context>
chip_gen: v5e
topology: v5e:2x2
jax: 0.10.0
libtpu: 0.0.40
codegen_flags: <defaults>
</compile_context>

<pallas_src>
import jax
import jax.numpy as jnp
from jax.experimental import pallas as pl
from jax.experimental.pallas import tpu as pltpu

_LANE_W = 512                          # lane-dense last dim (multiple of 128)
_TARGET_BLOCK_BYTES = 2 * 1024 * 1024  # ~2 MiB blocks


def _mish_kernel(x_ref, o_ref):
    x = x_ref[...].astype(jnp.float32)
    # x * tanh(softplus(x)) == x * (s^2 - 1) / (s^2 + 1), with s = 1 + e^x.
    # Clamp the exp argument at 20: for x >= 20 the ratio is exactly 1.0 in
    # f32 anyway, and the clamp keeps s^2 finite (no inf/inf -> NaN).
    # One EUP transcendental (exp) instead of exp + log1p + tanh.
    e = jnp.exp(jnp.minimum(x, 20.0))
    s = 1.0 + e
    s2 = s * s
    o_ref[...] = (x * ((s2 - 1.0) / (s2 + 1.0))).astype(o_ref.dtype)


def mish(x):
    """Mish forward. x: any shape, any float dtype. Returns same shape/dtype."""
    orig_shape = x.shape
    orig_dtype = x.dtype
    n = x.size
    if n == 0:                       # empty tensor: nothing to do
        return x
    itemsize = jnp.dtype(orig_dtype).itemsize
    sublane = max(8, 32 // itemsize)  # 8 (f32) / 16 (bf16) / 32 (int8)

    cols = _LANE_W
    rows = pl.cdiv(n, cols)
    pad_elems = rows * cols - n

    # ~2 MiB per block, rows a multiple of the sublane packing.
    target_tile_rows = max(
        sublane,
        (_TARGET_BLOCK_BYTES // (cols * itemsize)) // sublane * sublane,
    )
    if rows <= sublane:
        # Tiny tensor: one full-dim block (block dim == array dim is legal).
        tile_rows = rows
    elif rows <= target_tile_rows:
        # Whole tensor would fit in one block: split into >=2 blocks so both
        # v7x TensorCores get work on the "parallel" grid axis.
        tile_rows = pl.cdiv(pl.cdiv(rows, 2), sublane) * sublane
    else:
        tile_rows = target_tile_rows
    grid = (pl.cdiv(rows, tile_rows),)   # ragged final block is masked

    flat = x.reshape(-1)
    padded = pad_elems > 0
    if padded:
        # mish(0) == 0, so the pad region is benign.
        flat = jnp.pad(flat, (0, pad_elems))
    x2 = flat.reshape(rows, cols)

    call_kwargs = {}
    if padded:
        # The padded flat copy is private to this function -> safe to donate.
        call_kwargs["input_output_aliases"] = {0: 0}

    out2 = pl.pallas_call(
        _mish_kernel,
        out_shape=jax.ShapeDtypeStruct((rows, cols), orig_dtype),
        grid_spec=pl.GridSpec(
            grid=grid,
            in_specs=[pl.BlockSpec((tile_rows, cols), lambda i: (i, 0))],
            out_specs=pl.BlockSpec((tile_rows, cols), lambda i: (i, 0)),
        ),
        compiler_params=pltpu.CompilerParams(
            dimension_semantics=("parallel",),
        ),
        cost_estimate=pl.CostEstimate(
            flops=8 * n,
            transcendentals=n,
            bytes_accessed=2 * n * itemsize,
        ),
        **call_kwargs,
    )(x2)

    if padded:
        # Drop the pad and restore the original shape.
        return out2.reshape(-1)[:n].reshape(orig_shape)
    return out2.reshape(orig_shape)


def _mish_ref(x):
    # Exact PyTorch semantics: x * tanh(softplus(x)), stable softplus.
    xf = x.astype(jnp.float32)
    sp = jnp.maximum(xf, 0.0) + jnp.log1p(jnp.exp(-jnp.abs(xf)))
    return (xf * jnp.tanh(sp)).astype(x.dtype)


if __name__ == "__main__":
    key = jax.random.PRNGKey(0)
    # NCHW, matching the conv-feature-map inputs this activation sees.
    x = jax.random.normal(key, (2, 4, 16, 16), dtype=jnp.float32) * 3.0

    y = mish(x)
    y = jax.block_until_ready(y)

    y_ref = _mish_ref(x)
    assert y.shape == x.shape and y.dtype == x.dtype
    assert jnp.allclose(y, y_ref, atol=1e-5, rtol=1e-5)

    print("KERNEL_OK")
</pallas_src>

<mosaic_0001>
module attributes {stable_mosaic.version = 11 : i64} {
  func.func @_mish_kernel(%arg0: i32, %arg1: memref<4x512xf32, #tpu.memory_space<vmem>>, %arg2: memref<4x512xf32, #tpu.memory_space<vmem>>) attributes {dimension_semantics = [#tpu.dimension_semantics<parallel>], iteration_bounds = array<i64: 1>, scalar_prefetch = 0 : i64, scratch_operands = 0 : i64, tpu.core_type = #tpu.core_type<tc>, window_params = [{transform_indices = @transform_0, window_bounds = array<i64: 4, 512>}, {transform_indices = @transform_1, window_bounds = array<i64: 4, 512>}]} {
    %c0 = arith.constant 0 : index
    %c0_0 = arith.constant 0 : index
    %0 = vector.load %arg1[%c0, %c0_0] : memref<4x512xf32, #tpu.memory_space<vmem>>, vector<4x512xf32>
    %cst = arith.constant 2.000000e+01 : f32
    %1 = vector.broadcast %cst : f32 to vector<4x512xf32>
    %2 = arith.minimumf %0, %1 : vector<4x512xf32>
    %3 = math.exp %2 : vector<4x512xf32>
    %cst_1 = arith.constant 1.000000e+00 : f32
    %4 = vector.broadcast %cst_1 : f32 to vector<4x512xf32>
    %5 = arith.addf %4, %3 : vector<4x512xf32>
    %6 = arith.mulf %5, %5 : vector<4x512xf32>
    %cst_2 = arith.constant 1.000000e+00 : f32
    %7 = vector.broadcast %cst_2 : f32 to vector<4x512xf32>
    %8 = arith.subf %6, %7 : vector<4x512xf32>
    %cst_3 = arith.constant 1.000000e+00 : f32
    %9 = vector.broadcast %cst_3 : f32 to vector<4x512xf32>
    %10 = arith.addf %6, %9 : vector<4x512xf32>
    %11 = arith.divf %8, %10 : vector<4x512xf32>
    %12 = arith.mulf %0, %11 : vector<4x512xf32>
    %c0_4 = arith.constant 0 : index
    %c0_5 = arith.constant 0 : index
    %13 = vector.load %arg2[%c0_4, %c0_5] : memref<4x512xf32, #tpu.memory_space<vmem>>, vector<4x512xf32>
    tpu.vector_store %arg2[%c0_4, %c0_5], %12 {strides = array<i32>} : memref<4x512xf32, #tpu.memory_space<vmem>>, vector<4x512xf32>,
    return
  }
  func.func @transform_0(%arg0: i32) -> (i32, i32) {
    %c0_i32 = arith.constant 0 : i32
    %c0_i32_0 = arith.constant 0 : i32
    return %arg0, %c0_i32 : i32, i32
  }
  func.func @transform_1(%arg0: i32) -> (i32, i32) {
    %c0_i32 = arith.constant 0 : i32
    %c0_i32_0 = arith.constant 0 : i32
    return %arg0, %c0_i32 : i32, i32
  }
}

</mosaic_0001>

<llo_original>
// kernel: tpu_custom_call.1
$region0: #{tpu_custom_call.1}
  #allocation0 [shape = 'u32[]', space=smem, size = 0x4, offset = 0x4, fixed_abs, tag = 'smem constant byte address 0x4 - core index']
  #allocation1 [shape = 'u32[72,128]{1,0:T(1,128)}', space=vmem, size = 0x9000, scoped, tag = 'internal scratch']
  %s0 = inlined_call_operand.hbm [shape: f32[4,512], index: 0, kind: input, shape index: {}]
  %s1 = inlined_call_operand.hbm [shape: f32[4,512], index: 1, kind: output, shape index: {}]
  %s2 = sld [smem:[#allocation0]]
  $region18: #{tpu_custom_call.1} parent=0
    _
  %s4 = ssub.s32 1, %s2
  %s5 = scalar_select 0, %s4, %s2
  $region1: #{tpu_custom_call.1} parent=0
    #allocation2 [shape = 'u8[8192]{0}', space=vmem, size = 0x2000, scoped, tag = 'input window, operand 0, single buffered']
    #allocation3 [shape = 's32[1]{0}', space=sflag, size = 0x4, scoped, tag = 'scoped memory for tpu_custom_call.1']
    #allocation4 [shape = 's32[1]{0}', space=sflag, size = 0x4, scoped, tag = 'scoped memory for tpu_custom_call.1']
    #allocation5 [shape = 'u8[8192]{0}', space=vmem, size = 0x2000, scoped, tag = 'output window, operand 0, single buffered']
    %6 = vsyncpa [#allocation3], 0
    %7 = vsyncpa [#allocation4], 0
    // Predicated region
    $region2: #{tpu_custom_call.1} parent=1 // pred_check
      _
    $region3: #{tpu_custom_call.1} parent=1 // pred_check_branch
      %9 = sbr.rel (0) target = $region5
    $region4: #{tpu_custom_call.1} parent=1 // pred_region
      %11 = vsyncadd [#allocation3], 0
      %s13 = sshll.u32 %s0, 4
      %s14 = int_to_ptr.hbm [resolvable:$true] %s13
      %s15 = sshll.u32 [#allocation2], 4
      %s16 = int_to_ptr.vmem [resolvable:$true] %s15
      %18 = dma.hbm_to_vmem [thread:$0]  %s14, 256, %s16, [#allocation3]
    $region5: #{tpu_custom_call.1} parent=1 // pred_fallthru
      _
    // Predicated region
    $region6: #{tpu_custom_call.1} parent=1 // pred_check
      _
    $region7: #{tpu_custom_call.1} parent=1 // pred_check_branch
      %20 = sbr.rel (0) target = $region9
    $region8: #{tpu_custom_call.1} parent=1 // pred_region
      %22 = dma.done [#allocation3], 256
    $region9: #{tpu_custom_call.1} parent=1 // pred_fallthru
      _
    %v23 = vld [vmem:[#allocation2] sm:$0xff]
    %v24 = vld [vmem:[#allocation2 + $0x8] sm:$0xff]
    %v25 = vmin.f32 %v23, 20.0
    %v26 = vmin.f32 %v24, 20.0
    %v27 = vmul.f32 %v25, 1.442695
    %v28 = vpow.pop %v27
    %v29 = vmul.f32 %v26, 1.442695
    %v30 = vpow.pop %v29
    %v31 = vadd.f32 %v28, 1.0
    %v32 = vadd.f32 %v30, 1.0
    %v33 = vmul.f32 %v31, %v31
    %v34 = vmul.f32 %v32, %v32
    %v35 = vsub.f32 %v33, 1.0
    %v36 = vsub.f32 %v34, 1.0
    %v37 = vadd.f32 %v33, 1.0
    %v38 = vadd.f32 %v34, 1.0
    %v39 = vrcp.pop %v37
    %v40 = vmul.f32 %v37, %v39
    %v41 = vsub.f32 1.0, %v40
    %v42 = vmul.f32 %v39, %v41
    %v43 = vadd.f32 %v39, %v42
    %vm44 = vweird.f32 %v37
    %vm45 = vweird.f32 %v39
    %vm46 = vmor %vm44, %vm45
    %v47 = vsel %vm46, %v39, %v43
    %v48 = vand.u32 2147483647, %v37
    %vm49 = vcmp.eq.f32.partialorder %v48, 8.507059e+37
    %v50 = vand.u32 %v37, 2147483648
    %v51 = vor.u32 1.1754944e-38, %v50
    %v52 = vsel %vm49, %v51, %v47
    %v53 = vmul.f32 %v35, %v52
    %v54 = vrcp.pop %v38
    %v55 = vmul.f32 %v38, %v54
    %v56 = vsub.f32 1.0, %v55
    %v57 = vmul.f32 %v54, %v56
    %v58 = vadd.f32 %v54, %v57
    %vm59 = vweird.f32 %v38
    %vm60 = vweird.f32 %v54
    %vm61 = vmor %vm59, %vm60
    %v62 = vsel %vm61, %v54, %v58
    %v63 = vand.u32 2147483647, %v38
    %vm64 = vcmp.eq.f32.partialorder %v63, 8.507059e+37
    %v65 = vand.u32 %v38, 2147483648
    %v66 = vor.u32 1.1754944e-38, %v65
    %v67 = vsel %vm64, %v66, %v62
    %v68 = vmul.f32 %v36, %v67
    %v69 = vmul.f32 %v23, %v53
    %v70 = vmul.f32 %v24, %v68
    %71 = vst [vmem:[#allocation5] sm:$0xff] %v69
    %72 = vst [vmem:[#allocation5 + $0x8] sm:$0xff] %v70
    // Predicated region
    $region10: #{tpu_custom_call.1} parent=1 // pred_check
      _
    $region11: #{tpu_custom_call.1} parent=1 // pred_check_branch
      %74 = sbr.rel (0) target = $region13
    $region12: #{tpu_custom_call.1} parent=1 // pred_region
      %76 = vsyncadd [#allocation4], 0
      %s78 = sshll.u32 [#allocation5], 4
      %s79 = int_to_ptr.vmem [resolvable:$true] %s78
      %s80 = sshll.u32 %s1, 4
      %s81 = int_to_ptr.hbm [resolvable:$true] %s80
      %83 = dma.vmem_to_hbm [thread:$0]  %s79, 256, %s81, [#allocation4]
    $region13: #{tpu_custom_call.1} parent=1 // pred_fallthru
      _
    // Predicated region
    $region14: #{tpu_custom_call.1} parent=1 // pred_check
      _
    $region15: #{tpu_custom_call.1} parent=1 // pred_check_branch
      %85 = sbr.rel (0) target = $region17
    $region16: #{tpu_custom_call.1} parent=1 // pred_region
      %87 = dma.done [#allocation4], 256
    $region17: #{tpu_custom_call.1} parent=1 // pred_fallthru
      _
    %88 = vsyncpa [#allocation3], 1
    %89 = vsyncpa [#allocation4], 1

</llo_original>
